<compile_context>
chip_gen: v7x
topology: tpu7x:2x2x1
jax: 0.10.0
libtpu: 0.0.40
codegen_flags: <defaults>
</compile_context>

<pallas_src>
import functools

import numpy as np
import jax
import jax.numpy as jnp
from jax.experimental import pallas as pl
from jax.experimental.pallas import tpu as pltpu

# ----------------------------- model dimensions -----------------------------
NFEATS = 3        # ShapeAdversarySimplePC default nfeats=3
DIM_OUT = 1       # PointNetT(nfeats, 1): one realness score per cloud
N_POINTS = 16
BATCH = 2

H1, H2, H3 = 32, 64, 128     # pointwise (1x1 conv) widths
F1, F2 = 64, 32              # FC head widths

LANE = 128                   # every layer padded to 128 lanes
N_LAYERS = 6                 # conv1..conv3, fc1..fc3
N_MXU_LAYERS = N_LAYERS - 1  # layers 1..5 use the MXU; layer 0 (K=3) uses the VPU
AUX_ROWS = 16                # rows 0..5: biases; rows 8..8+NFEATS-1: layer-0 weight rows
VALID_IN = (NFEATS, H1, H2, H3, F1, F2)
VALID_OUT = (H1, H2, H3, F1, F2, DIM_OUT)


def _round_up(x, m):
    return ((x + m - 1) // m) * m


# --------------------------------- kernel -----------------------------------
def _adversary_kernel(n_points, n_clouds, n_pad,
                      x_ref, tw_ref, w_ref, aux_ref, score_ref, loss_ref):
    """x_ref:   (n_clouds*n_points, NFEATS) f32 raw points (no wrapper padding).
    tw_ref:   (2*n_pad, LANE) f32: rows [0:n_pad] per-cloud loss weight (lane 0),
              rows [n_pad:2*n_pad] per-cloud LSGAN target (lane 0), zero elsewhere.
    w_ref:    (5*LANE, LANE) bf16 packed weights for layers 1..5.
    aux_ref:  (16, LANE) f32: rows 0..5 = biases of layers 0..5,
              rows 8..8+NFEATS-1 = layer-0 weight rows (pre-rounded to bf16).
    score_ref:(n_pad, LANE) f32 lane-dense scores (cloud b's score at [b, 0]).
    loss_ref: (1, 1) f32 SMEM scalar: fused LSGAN loss."""

    def dense(h_bf16, slab_idx, bias_row, relu):
        w = w_ref[slab_idx * LANE:(slab_idx + 1) * LANE, :]   # tile-aligned static slice
        acc = jnp.dot(h_bf16, w, preferred_element_type=jnp.float32)  # MXU, f32 acc
        acc = acc + aux_ref[bias_row:bias_row + 1, :]                  # f32 bias row
        return jnp.maximum(acc, 0.0) if relu else acc

    # Layer 0 (1x1 conv, K = NFEATS = 3): three VPU broadcast-FMAs instead of a
    # K=128 MXU matmul over a mostly-zero padded slab -> no input padding needed.
    x = x_ref[...].astype(jnp.bfloat16).astype(jnp.float32)   # bf16-round like the MXU
    acc = x[:, 0:1] * aux_ref[8:9, :]
    for c in range(1, NFEATS):
        acc = acc + x[:, c:c + 1] * aux_ref[8 + c:9 + c, :]
    h = jnp.maximum(acc + aux_ref[0:1, :], 0.0)               # (M, LANE) f32

    # Shared point MLP layers 1..2 (bf16 operands, f32 accumulate).
    h = dense(h.astype(jnp.bfloat16), 0, 1, True)
    h = dense(h.astype(jnp.bfloat16), 1, 2, True)             # (M, LANE) f32

    # Global max-pool over points: layout-free reshape (n_points % 8 == 0) + reduce.
    g = jnp.max(h.reshape(n_clouds, n_points, LANE), axis=1)  # (n_clouds, LANE)
    if n_pad > n_clouds:                                      # pad to 8 sublanes
        g = jnp.concatenate(
            [g, jnp.zeros((n_pad - n_clouds, LANE), g.dtype)], axis=0)

    # FC head (layers 3..5).
    g = dense(g.astype(jnp.bfloat16), 2, 3, True)
    g = dense(g.astype(jnp.bfloat16), 3, 4, True)
    final = dense(g.astype(jnp.bfloat16), 4, 5, False)        # (n_pad, LANE) f32

    score_ref[...] = final                                    # unmasked full-tile store

    # Fused LSGAN loss: sum_b w_b * (score_b - target_b)^2 ; pad rows/lanes have w=0.
    wgt = tw_ref[0:n_pad, :]
    tgt = tw_ref[n_pad:2 * n_pad, :]
    diff = final - tgt
    loss_ref[0, 0] = jnp.sum(diff * diff * wgt)


# ------------------------------- packing ------------------------------------
def pack_params(params):
    """Pack (w1,b1,...,wf3,bf3) into one bf16 weight slab (layers 1..5) and one
    f32 aux slab (all biases + layer-0 weight rows, bf16-pre-rounded)."""
    w_slab = jnp.zeros((N_MXU_LAYERS * LANE, LANE), jnp.float32)
    aux = jnp.zeros((AUX_ROWS, LANE), jnp.float32)
    for i in range(N_LAYERS):
        w, b = params[2 * i], params[2 * i + 1]
        din, dout = w.shape
        aux = aux.at[i, :dout].set(b)
        if i == 0:
            w0 = w.astype(jnp.bfloat16).astype(jnp.float32)   # match MXU rounding
            aux = aux.at[8:8 + din, :dout].set(w0)
        else:
            j = i - 1
            w_slab = w_slab.at[j * LANE:j * LANE + din, :dout].set(w)
    return w_slab.astype(jnp.bfloat16), aux


def _tw_constant(weights, targets, n_pad):
    """Per-cloud LSGAN weight/target tile, built host-side as a constant."""
    tw = np.zeros((2 * n_pad, LANE), np.float32)
    tw[:len(weights), 0] = weights
    tw[n_pad:n_pad + len(targets), 0] = targets
    return jnp.asarray(tw)


# ------------------------------- kernel call ---------------------------------
def _run(x_flat, tw, w_slab, aux_slab, n_points, n_clouds, n_pad):
    m = x_flat.shape[0]
    kernel = functools.partial(_adversary_kernel, n_points, n_clouds, n_pad)
    return pl.pallas_call(
        kernel,
        out_shape=(jax.ShapeDtypeStruct((n_pad, LANE), jnp.float32),
                   jax.ShapeDtypeStruct((1, 1), jnp.float32)),
        grid=(1,),
        in_specs=[
            pl.BlockSpec((m, NFEATS), lambda i: (0, 0)),       # raw points (block == array)
            pl.BlockSpec(tw.shape, lambda i: (0, 0)),          # loss weights / targets
            pl.BlockSpec(w_slab.shape, lambda i: (0, 0)),      # packed bf16 weights
            pl.BlockSpec(aux_slab.shape, lambda i: (0, 0)),    # biases + layer-0 weights
        ],
        out_specs=(
            pl.BlockSpec((n_pad, LANE), lambda i: (0, 0)),     # lane-dense scores
            pl.BlockSpec(memory_space=pltpu.MemorySpace.SMEM), # fused scalar loss
        ),
        compiler_params=pltpu.CompilerParams(
            dimension_semantics=("arbitrary",)),
    )(x_flat, tw, w_slab, aux_slab)


# ------------------------------- wrappers ------------------------------------
def pointnet_scores(pc, w_slab, aux_slab):
    """pc: (B, N, NFEATS) f32 -> (B,) realness scores (== PointNetT forward)."""
    b, n, c = pc.shape
    assert c == NFEATS
    n_pad = _round_up(b, 8)
    tw = _tw_constant(np.zeros((b,), np.float32), np.zeros((b,), np.float32), n_pad)
    scores, _ = _run(pc.reshape(b * n, c), tw, w_slab, aux_slab, n, b, n_pad)
    return scores[:b, 0]


def shape_adversary_forward(for_gen, pc_fake, w_slab, aux_slab, pc_real=None):
    """ShapeAdversarySimplePC.forward with the LSGAN loss fused into the kernel."""
    c = pc_fake.shape[-1]
    if for_gen:
        b, n, _ = pc_fake.shape
        x = pc_fake.reshape(b * n, c)
        weights = np.full((b,), 0.5 / b, np.float32)
        targets = np.ones((b,), np.float32)
        n_clouds = b
    else:
        pc_fake = jax.lax.stop_gradient(pc_fake)               # pc_fake.detach()
        br, n, _ = pc_real.shape
        bf = pc_fake.shape[0]
        assert pc_fake.shape[1] == n
        # One small HBM concat so a single kernel launch scores real + fake clouds.
        x = jnp.concatenate(
            [pc_real.reshape(br * n, c), pc_fake.reshape(bf * n, c)], axis=0)
        weights = np.concatenate([np.full((br,), 0.5 / br, np.float32),
                                  np.full((bf,), 0.5 / bf, np.float32)])
        targets = np.concatenate([np.ones((br,), np.float32),
                                  np.zeros((bf,), np.float32)])
        n_clouds = br + bf
    n_pad = _round_up(n_clouds, 8)
    tw = _tw_constant(weights, targets, n_pad)
    _, loss = _run(x, tw, w_slab, aux_slab, n, n_clouds, n_pad)
    return loss[0, 0]


# ------------------------------- reference -----------------------------------
def init_params(key):
    params = []
    for i, (din, dout) in enumerate(zip(VALID_IN, VALID_OUT)):
        kw = jax.random.fold_in(key, 2 * i)
        kb = jax.random.fold_in(key, 2 * i + 1)
        w = jax.random.normal(kw, (din, dout), jnp.float32) / jnp.sqrt(jnp.float32(din))
        b = 0.05 * jax.random.normal(kb, (dout,), jnp.float32)
        params.extend([w, b])
    return tuple(params)


def reference_scores(pc, params):
    """Plain-JAX reference with matching bf16-matmul / f32-accumulate numerics."""
    def dense(h, w, b, relu=True):
        acc = jnp.dot(h.astype(jnp.bfloat16), w.astype(jnp.bfloat16),
                      preferred_element_type=jnp.float32) + b
        return jnp.maximum(acc, 0.0) if relu else acc

    (w1, b1, w2, b2, w3, b3, wf1, bf1, wf2, bf2, wf3, bf3) = params
    B, N, C = pc.shape
    h = pc.reshape(B * N, C)
    h = dense(h, w1, b1)
    h = dense(h, w2, b2)
    h = dense(h, w3, b3)
    g = jnp.max(h.reshape(B, N, H3), axis=1)
    g = dense(g, wf1, bf1)
    g = dense(g, wf2, bf2)
    return dense(g, wf3, bf3, relu=False)[:, 0]


def reference_forward(for_gen, pc_fake, params, pc_real=None):
    if for_gen:
        s = reference_scores(pc_fake, params)
        return 0.5 * jnp.mean((s - 1.0) ** 2)
    real_loss = jnp.mean((reference_scores(pc_real, params) - 1.0) ** 2)
    fake_loss = jnp.mean(reference_scores(pc_fake, params) ** 2)
    return 0.5 * (real_loss + fake_loss)


# --------------------------------- main --------------------------------------
if __name__ == "__main__":
    key = jax.random.PRNGKey(0)
    k_fake, k_real, k_w = jax.random.split(key, 3)

    pc_fake = jax.random.normal(k_fake, (BATCH, N_POINTS, NFEATS), jnp.float32)
    pc_real = jax.random.normal(k_real, (BATCH, N_POINTS, NFEATS), jnp.float32)
    params = init_params(k_w)
    w_slab, aux_slab = pack_params(params)

    # Discriminator scores (PointNetT forward) vs reference.
    s_kernel = jax.block_until_ready(pointnet_scores(pc_fake, w_slab, aux_slab))
    s_ref = reference_scores(pc_fake, params)
    assert s_kernel.shape == (BATCH,)
    assert jnp.allclose(s_kernel, s_ref, atol=1e-3, rtol=1e-3), "score mismatch"

    # Generator-loss branch (fused in-kernel loss).
    g_loss = jax.block_until_ready(
        shape_adversary_forward(True, pc_fake, w_slab, aux_slab))
    g_ref = reference_forward(True, pc_fake, params)
    assert jnp.allclose(g_loss, g_ref, atol=1e-3, rtol=1e-3), "g_loss mismatch"

    # Discriminator-loss branch (fused in-kernel loss).
    d_loss = jax.block_until_ready(
        shape_adversary_forward(False, pc_fake, w_slab, aux_slab, pc_real=pc_real))
    d_ref = reference_forward(False, pc_fake, params, pc_real=pc_real)
    assert jnp.allclose(d_loss, d_ref, atol=1e-3, rtol=1e-3), "d_loss mismatch"

    print("KERNEL_OK")
</pallas_src>

<mosaic_0001>
module attributes {stable_mosaic.version = 11 : i64} {
  func.func @_adversary_kernel(%arg0: i32, %arg1: memref<32x3xf32, #tpu.memory_space<vmem>>, %arg2: memref<16x128xf32, #tpu.memory_space<vmem>>, %arg3: memref<640x128xbf16, #tpu.memory_space<vmem>>, %arg4: memref<16x128xf32, #tpu.memory_space<vmem>>, %arg5: memref<8x128xf32, #tpu.memory_space<vmem>>, %arg6: memref<1x1xf32, #tpu.memory_space<smem>>) attributes {dimension_semantics = [#tpu.dimension_semantics<arbitrary>], iteration_bounds = array<i64: 1>, scalar_prefetch = 0 : i64, scratch_operands = 0 : i64, tpu.core_type = #tpu.core_type<tc>, window_params = [{pipeline_mode = #tpu.pipeline_mode<synchronous>, transform_indices = @transform_0, window_bounds = array<i64: 32, 3>}, {pipeline_mode = #tpu.pipeline_mode<synchronous>, transform_indices = @transform_1, window_bounds = array<i64: 16, 128>}, {pipeline_mode = #tpu.pipeline_mode<synchronous>, transform_indices = @transform_2, window_bounds = array<i64: 640, 128>}, {pipeline_mode = #tpu.pipeline_mode<synchronous>, transform_indices = @transform_3, window_bounds = array<i64: 16, 128>}, {pipeline_mode = #tpu.pipeline_mode<synchronous>, transform_indices = @transform_4, window_bounds = array<i64: 8, 128>}, {transform_indices = @transform_5, window_bounds = array<i64: 1, 1>}]} {
    %c0 = arith.constant 0 : index
    %c0_0 = arith.constant 0 : index
    %0 = vector.load %arg1[%c0, %c0_0] : memref<32x3xf32, #tpu.memory_space<vmem>>, vector<32x3xf32>
    %1 = arith.truncf %0 : vector<32x3xf32> to vector<32x3xbf16>
    %2 = arith.extf %1 : vector<32x3xbf16> to vector<32x3xf32>
    %3 = vector.extract_strided_slice %2 {offsets = [0, 0], sizes = [32, 1], strides = [1, 1]} : vector<32x3xf32> to vector<32x1xf32>
    %c8 = arith.constant 8 : index
    %c0_1 = arith.constant 0 : index
    %4 = vector.load %arg4[%c8, %c0_1] : memref<16x128xf32, #tpu.memory_space<vmem>>, vector<1x128xf32>
    %5 = vector.broadcast %3 : vector<32x1xf32> to vector<32x128xf32>
    %6 = vector.broadcast %4 : vector<1x128xf32> to vector<32x128xf32>
    %7 = arith.mulf %5, %6 : vector<32x128xf32>
    %8 = vector.extract_strided_slice %2 {offsets = [0, 1], sizes = [32, 1], strides = [1, 1]} : vector<32x3xf32> to vector<32x1xf32>
    %c9 = arith.constant 9 : index
    %c0_2 = arith.constant 0 : index
    %9 = vector.load %arg4[%c9, %c0_2] : memref<16x128xf32, #tpu.memory_space<vmem>>, vector<1x128xf32>
    %10 = vector.broadcast %8 : vector<32x1xf32> to vector<32x128xf32>
    %11 = vector.broadcast %9 : vector<1x128xf32> to vector<32x128xf32>
    %12 = arith.mulf %10, %11 : vector<32x128xf32>
    %13 = arith.addf %7, %12 : vector<32x128xf32>
    %14 = vector.extract_strided_slice %2 {offsets = [0, 2], sizes = [32, 1], strides = [1, 1]} : vector<32x3xf32> to vector<32x1xf32>
    %c10 = arith.constant 10 : index
    %c0_3 = arith.constant 0 : index
    %15 = vector.load %arg4[%c10, %c0_3] : memref<16x128xf32, #tpu.memory_space<vmem>>, vector<1x128xf32>
    %16 = vector.broadcast %14 : vector<32x1xf32> to vector<32x128xf32>
    %17 = vector.broadcast %15 : vector<1x128xf32> to vector<32x128xf32>
    %18 = arith.mulf %16, %17 : vector<32x128xf32>
    %19 = arith.addf %13, %18 : vector<32x128xf32>
    %c0_4 = arith.constant 0 : index
    %c0_5 = arith.constant 0 : index
    %20 = vector.load %arg4[%c0_4, %c0_5] : memref<16x128xf32, #tpu.memory_space<vmem>>, vector<1x128xf32>
    %21 = vector.broadcast %20 : vector<1x128xf32> to vector<32x128xf32>
    %22 = arith.addf %19, %21 : vector<32x128xf32>
    %cst = arith.constant 0.000000e+00 : f32
    %23 = vector.broadcast %cst : f32 to vector<32x128xf32>
    %24 = arith.maximumf %22, %23 : vector<32x128xf32>
    %25 = arith.truncf %24 : vector<32x128xf32> to vector<32x128xbf16>
    %c0_6 = arith.constant 0 : index
    %c0_7 = arith.constant 0 : index
    %26 = vector.load %arg3[%c0_6, %c0_7] : memref<640x128xbf16, #tpu.memory_space<vmem>>, vector<128x128xbf16>
    %cst_8 = arith.constant dense<0.000000e+00> : vector<32x128xf32>
    %27 = tpu.matmul %25, %26, %cst_8 {dimension_numbers = #tpu.dot_dimension_numbers<[1], [0], [0], [1], [0, 0, 1, 1], [], []>} : vector<32x128xbf16>, vector<128x128xbf16>, vector<32x128xf32> -> vector<32x128xf32>
    %c1 = arith.constant 1 : index
    %c0_9 = arith.constant 0 : index
    %28 = vector.load %arg4[%c1, %c0_9] : memref<16x128xf32, #tpu.memory_space<vmem>>, vector<1x128xf32>
    %29 = vector.broadcast %28 : vector<1x128xf32> to vector<32x128xf32>
    %30 = arith.addf %27, %29 : vector<32x128xf32>
    %cst_10 = arith.constant 0.000000e+00 : f32
    %31 = vector.broadcast %cst_10 : f32 to vector<32x128xf32>
    %32 = arith.maximumf %30, %31 : vector<32x128xf32>
    %33 = arith.truncf %32 : vector<32x128xf32> to vector<32x128xbf16>
    %c128 = arith.constant 128 : index
    %c0_11 = arith.constant 0 : index
    %34 = vector.load %arg3[%c128, %c0_11] : memref<640x128xbf16, #tpu.memory_space<vmem>>, vector<128x128xbf16>
    %cst_12 = arith.constant dense<0.000000e+00> : vector<32x128xf32>
    %35 = tpu.matmul %33, %34, %cst_12 {dimension_numbers = #tpu.dot_dimension_numbers<[1], [0], [0], [1], [0, 0, 1, 1], [], []>} : vector<32x128xbf16>, vector<128x128xbf16>, vector<32x128xf32> -> vector<32x128xf32>
    %c2 = arith.constant 2 : index
    %c0_13 = arith.constant 0 : index
    %36 = vector.load %arg4[%c2, %c0_13] : memref<16x128xf32, #tpu.memory_space<vmem>>, vector<1x128xf32>
    %37 = vector.broadcast %36 : vector<1x128xf32> to vector<32x128xf32>
    %38 = arith.addf %35, %37 : vector<32x128xf32>
    %cst_14 = arith.constant 0.000000e+00 : f32
    %39 = vector.broadcast %cst_14 : f32 to vector<32x128xf32>
    %40 = arith.maximumf %38, %39 : vector<32x128xf32>
    %41 = vector.shape_cast %40 : vector<32x128xf32> to vector<2x16x128xf32>
    %cst_15 = arith.constant dense<0xFF800000> : vector<2x128xf32>
    %42 = vector.multi_reduction <maximumf>, %41, %cst_15 [1] : vector<2x16x128xf32> to vector<2x128xf32>
    %cst_16 = arith.constant 0.000000e+00 : f32
    %43 = vector.broadcast %cst_16 : f32 to vector<6x128xf32>
    %44 = tpu.concatenate %42, %43 in 0 : vector<2x128xf32>, vector<6x128xf32> -> vector<8x128xf32>
    %45 = arith.truncf %44 : vector<8x128xf32> to vector<8x128xbf16>
    %c256 = arith.constant 256 : index
    %c0_17 = arith.constant 0 : index
    %46 = vector.load %arg3[%c256, %c0_17] : memref<640x128xbf16, #tpu.memory_space<vmem>>, vector<128x128xbf16>
    %cst_18 = arith.constant dense<0.000000e+00> : vector<8x128xf32>
    %47 = tpu.matmul %45, %46, %cst_18 {dimension_numbers = #tpu.dot_dimension_numbers<[1], [0], [0], [1], [0, 0, 1, 1], [], []>} : vector<8x128xbf16>, vector<128x128xbf16>, vector<8x128xf32> -> vector<8x128xf32>
    %c3 = arith.constant 3 : index
    %c0_19 = arith.constant 0 : index
    %48 = vector.load %arg4[%c3, %c0_19] : memref<16x128xf32, #tpu.memory_space<vmem>>, vector<1x128xf32>
    %49 = vector.broadcast %48 : vector<1x128xf32> to vector<8x128xf32>
    %50 = arith.addf %47, %49 : vector<8x128xf32>
    %cst_20 = arith.constant 0.000000e+00 : f32
    %51 = vector.broadcast %cst_20 : f32 to vector<8x128xf32>
    %52 = arith.maximumf %50, %51 : vector<8x128xf32>
    %53 = arith.truncf %52 : vector<8x128xf32> to vector<8x128xbf16>
    %c384 = arith.constant 384 : index
    %c0_21 = arith.constant 0 : index
    %54 = vector.load %arg3[%c384, %c0_21] : memref<640x128xbf16, #tpu.memory_space<vmem>>, vector<128x128xbf16>
    %cst_22 = arith.constant dense<0.000000e+00> : vector<8x128xf32>
    %55 = tpu.matmul %53, %54, %cst_22 {dimension_numbers = #tpu.dot_dimension_numbers<[1], [0], [0], [1], [0, 0, 1, 1], [], []>} : vector<8x128xbf16>, vector<128x128xbf16>, vector<8x128xf32> -> vector<8x128xf32>
    %c4 = arith.constant 4 : index
    %c0_23 = arith.constant 0 : index
    %56 = vector.load %arg4[%c4, %c0_23] : memref<16x128xf32, #tpu.memory_space<vmem>>, vector<1x128xf32>
    %57 = vector.broadcast %56 : vector<1x128xf32> to vector<8x128xf32>
    %58 = arith.addf %55, %57 : vector<8x128xf32>
    %cst_24 = arith.constant 0.000000e+00 : f32
    %59 = vector.broadcast %cst_24 : f32 to vector<8x128xf32>
    %60 = arith.maximumf %58, %59 : vector<8x128xf32>
    %61 = arith.truncf %60 : vector<8x128xf32> to vector<8x128xbf16>
    %c512 = arith.constant 512 : index
    %c0_25 = arith.constant 0 : index
    %62 = vector.load %arg3[%c512, %c0_25] : memref<640x128xbf16, #tpu.memory_space<vmem>>, vector<128x128xbf16>
    %cst_26 = arith.constant dense<0.000000e+00> : vector<8x128xf32>
    %63 = tpu.matmul %61, %62, %cst_26 {dimension_numbers = #tpu.dot_dimension_numbers<[1], [0], [0], [1], [0, 0, 1, 1], [], []>} : vector<8x128xbf16>, vector<128x128xbf16>, vector<8x128xf32> -> vector<8x128xf32>
    %c5 = arith.constant 5 : index
    %c0_27 = arith.constant 0 : index
    %64 = vector.load %arg4[%c5, %c0_27] : memref<16x128xf32, #tpu.memory_space<vmem>>, vector<1x128xf32>
    %65 = vector.broadcast %64 : vector<1x128xf32> to vector<8x128xf32>
    %66 = arith.addf %63, %65 : vector<8x128xf32>
    %c0_28 = arith.constant 0 : index
    %c0_29 = arith.constant 0 : index
    %67 = vector.load %arg5[%c0_28, %c0_29] : memref<8x128xf32, #tpu.memory_space<vmem>>, vector<8x128xf32>
    tpu.vector_store %arg5[%c0_28, %c0_29], %66 {strides = array<i32>} : memref<8x128xf32, #tpu.memory_space<vmem>>, vector<8x128xf32>,
    %c0_30 = arith.constant 0 : index
    %c0_31 = arith.constant 0 : index
    %68 = vector.load %arg2[%c0_30, %c0_31] : memref<16x128xf32, #tpu.memory_space<vmem>>, vector<8x128xf32>
    %c8_32 = arith.constant 8 : index
    %c0_33 = arith.constant 0 : index
    %69 = vector.load %arg2[%c8_32, %c0_33] : memref<16x128xf32, #tpu.memory_space<vmem>>, vector<8x128xf32>
    %70 = arith.subf %66, %69 : vector<8x128xf32>
    %71 = arith.mulf %70, %70 : vector<8x128xf32>
    %72 = arith.mulf %71, %68 : vector<8x128xf32>
    %73 = vector.shape_cast %72 : vector<8x128xf32> to vector<1x8x128xf32>
    %cst_34 = arith.constant dense<0.000000e+00> : vector<1xf32>
    %74 = vector.multi_reduction <add>, %73, %cst_34 [1, 2] : vector<1x8x128xf32> to vector<1xf32>
    %75 = vector.shape_cast %74 : vector<1xf32> to vector<1x1x1xf32>
    %76 = vector.extract %75[0, 0, 0] : f32 from vector<1x1x1xf32>
    %c0_35 = arith.constant 0 : index
    %c0_36 = arith.constant 0 : index
    %77 = memref.load %arg6[%c0_35, %c0_36] : memref<1x1xf32, #tpu.memory_space<smem>>
    memref.store %76, %arg6[%c0_35, %c0_36] : memref<1x1xf32, #tpu.memory_space<smem>>
    return
  }
  func.func @transform_0(%arg0: i32) -> (i32, i32) {
    %c0_i32 = arith.constant 0 : i32
    %c0_i32_0 = arith.constant 0 : i32
    %c0_i32_1 = arith.constant 0 : i32
    return %c0_i32, %c0_i32_0 : i32, i32
  }
  func.func @transform_1(%arg0: i32) -> (i32, i32) {
    %c0_i32 = arith.constant 0 : i32
    %c0_i32_0 = arith.constant 0 : i32
    %c0_i32_1 = arith.constant 0 : i32
    return %c0_i32, %c0_i32_0 : i32, i32
  }
  func.func @transform_2(%arg0: i32) -> (i32, i32) {
    %c0_i32 = arith.constant 0 : i32
    %c0_i32_0 = arith.constant 0 : i32
    %c0_i32_1 = arith.constant 0 : i32
    return %c0_i32, %c0_i32_0 : i32, i32
  }
  func.func @transform_3(%arg0: i32) -> (i32, i32) {
    %c0_i32 = arith.constant 0 : i32
    %c0_i32_0 = arith.constant 0 : i32
    %c0_i32_1 = arith.constant 0 : i32
    return %c0_i32, %c0_i32_0 : i32, i32
  }
  func.func @transform_4(%arg0: i32) -> (i32, i32) {
    %c0_i32 = arith.constant 0 : i32
    %c0_i32_0 = arith.constant 0 : i32
    %c0_i32_1 = arith.constant 0 : i32
    return %c0_i32, %c0_i32_0 : i32, i32
  }
  func.func @transform_5(%arg0: i32) -> (i32, i32) {
    %c0_i32 = arith.constant 0 : i32
    %c0_i32_0 = arith.constant 0 : i32
    %c0_i32_1 = arith.constant 0 : i32
    return %c0_i32, %c0_i32_0 : i32, i32
  }
}

</mosaic_0001>

<llo_original>
// kernel: tpu_custom_call.1
$region0: #{tpu_custom_call.1}
  #allocation0 [shape = 'u32[]', space=smem, size = 0x4, offset = 0x4, fixed_abs, tag = 'smem constant byte address 0x4 - core index']
  #allocation1 [shape = 'u32[144,128]{1,0:T(1,128)}', space=vmem, size = 0x12000, scoped, tag = 'internal scratch']
  %s0 = inlined_call_operand.vmem [shape: f32[32,3], index: 0, kind: input, shape index: {}]
  %s1 = inlined_call_operand.vmem [shape: f32[16,128], index: 1, kind: input, shape index: {}]
  %s2 = inlined_call_operand.hbm [shape: bf16[640,128], index: 2, kind: input, shape index: {}]
  %s3 = inlined_call_operand.vmem [shape: f32[16,128], index: 3, kind: input, shape index: {}]
  %s4 = inlined_call_operand.hbm [shape: f32[8,128], index: 4, kind: output, shape index: {0}]
  %s5 = inlined_call_operand.hbm [shape: f32[1,1], index: 5, kind: output, shape index: {1}]
  %6 = xla_tuple %s4, %s5
  %s7 = sld [smem:[#allocation0]]
  $region38: #{tpu_custom_call.1} parent=0
    _
  %s9 = ssub.s32 1, %s7
  %s10 = scalar_select 0, %s9, %s7
  $region1: #{tpu_custom_call.1} parent=0
    #allocation2 [shape = 'u8[163840]{0}', space=vmem, size = 0x28000, scoped, tag = 'input window, operand 2, single buffered']
    #allocation3 [shape = 's32[1]{0}', space=sflag, size = 0x4, scoped, tag = 'scoped memory for tpu_custom_call.1']
    #allocation4 [shape = 's32[1]{0}', space=sflag, size = 0x4, scoped, tag = 'scoped memory for tpu_custom_call.1']
    #allocation5 [shape = 's32[1]{0}', space=sflag, size = 0x4, scoped, tag = 'scoped memory for tpu_custom_call.1']
    #allocation6 [shape = 'u8[4096]{0}', space=vmem, size = 0x1000, scoped, tag = 'output window, operand 0, single buffered']
    #allocation7 [shape = 'u8[512]{0}', space=smem, size = 0x200, scoped, tag = 'output window, operand 1, single buffered']
    %11 = vsyncpa [#allocation3], 0
    %12 = vsyncpa [#allocation4], 0
    %13 = vsyncpa [#allocation5], 0
    // Predicated region
    $region2: #{tpu_custom_call.1} parent=1 // pred_check
      _
    $region3: #{tpu_custom_call.1} parent=1 // pred_check_branch
      %15 = sbr.rel (0) target = $region5
    $region4: #{tpu_custom_call.1} parent=1 // pred_region
      _
    $region5: #{tpu_custom_call.1} parent=1 // pred_fallthru
      _
    // Predicated region
    $region6: #{tpu_custom_call.1} parent=1 // pred_check
      _
    $region7: #{tpu_custom_call.1} parent=1 // pred_check_branch
      %17 = sbr.rel (0) target = $region9
    $region8: #{tpu_custom_call.1} parent=1 // pred_region
      _
    $region9: #{tpu_custom_call.1} parent=1 // pred_fallthru
      _
    // Predicated region
    $region10: #{tpu_custom_call.1} parent=1 // pred_check
      _
    $region11: #{tpu_custom_call.1} parent=1 // pred_check_branch
      %19 = sbr.rel (0) target = $region13
    $region12: #{tpu_custom_call.1} parent=1 // pred_region
      %s21 = ssub.s32 5120, 5120
      %22 = vsyncadd [#allocation3], %s21
      %s23 = sshll.u32 [#allocation2], 4
      %s24 = int_to_ptr.vmem [resolvable:$true] %s23
      %29 = dma.hbm_to_vmem [thread:$0]  %s2, 5120, %s24, [#allocation3], 64, 64, 4
    $region13: #{tpu_custom_call.1} parent=1 // pred_fallthru
      _
    // Predicated region
    $region14: #{tpu_custom_call.1} parent=1 // pred_check
      _
    $region15: #{tpu_custom_call.1} parent=1 // pred_check_branch
      %31 = sbr.rel (0) target = $region17
    $region16: #{tpu_custom_call.1} parent=1 // pred_region
      _
    $region17: #{tpu_custom_call.1} parent=1 // pred_fallthru
      _
    // Predicated region
    $region18: #{tpu_custom_call.1} parent=1 // pred_check
      _
    $region19: #{tpu_custom_call.1} parent=1 // pred_check_branch
      %33 = sbr.rel (0) target = $region21
    $region20: #{tpu_custom_call.1} parent=1 // pred_region
      %34 = dma.done [#allocation3], 5120
    $region21: #{tpu_custom_call.1} parent=1 // pred_fallthru
      _
    %v36 = vld [vmem:[%s0] sm:$0xff]
    %v37 = vld [vmem:[%s0 + $0x8] sm:$0xff]
    %v38 = vld [vmem:[%s0 + $0x10] sm:$0xff]
    %v39 = vld [vmem:[%s0 + $0x18] sm:$0xff]
    %v40 = vpack.c.bf16 %v37, %v36
    %v41 = vpack.c.bf16 %v39, %v38
    %v42 = vunpack.c.l.bf16 %v40
    %v43 = vunpack.c.h.bf16 %v40
    %v44 = vunpack.c.l.bf16 %v41
    %v45 = vunpack.c.h.bf16 %v41
    %v46 = vld [vmem:[%s3 + $0x8] sm:$0x1]
    %48 = vset.pattern.permute.xlu0 0
    %49 = vperm.xlu0 %48, %v42
    %v50 = vpop.permute.xlu0 %49
    %53 = vset.pattern.permute.xlu0 0
    %54 = vperm.xlu0 %53, %v43
    %v55 = vpop.permute.xlu0 %54
    %58 = vset.pattern.permute.xlu0 0
    %59 = vperm.xlu0 %58, %v44
    %v60 = vpop.permute.xlu0 %59
    %63 = vset.pattern.permute.xlu0 0
    %64 = vperm.xlu0 %63, %v45
    %v65 = vpop.permute.xlu0 %64
    %v67 = vlaneseq
    %v68 = vshrl.u32 %v67, 7
    %v69 = vsub.s32 0, %v68
    %v70 = vrot.slane %v46, %v69
    %v71 = vmul.f32 %v50, %v70
    %v72 = vmul.f32 %v55, %v70
    %v73 = vmul.f32 %v60, %v70
    %v74 = vmul.f32 %v65, %v70
    %v75 = vld [vmem:[%s3 + $0x9] sm:$0x1]
    %76 = vset.pattern.permute.xlu0 1
    %77 = vperm.xlu0 %76, %v42
    %v78 = vpop.permute.xlu0 %77
    %80 = vset.pattern.permute.xlu0 1
    %81 = vperm.xlu0 %80, %v43
    %v82 = vpop.permute.xlu0 %81
    %84 = vset.pattern.permute.xlu0 1
    %85 = vperm.xlu0 %84, %v44
    %v86 = vpop.permute.xlu0 %85
    %88 = vset.pattern.permute.xlu0 1
    %89 = vperm.xlu0 %88, %v45
    %v90 = vpop.permute.xlu0 %89
    %v92 = vlaneseq
    %v93 = vshrl.u32 %v92, 7
    %v94 = vsub.s32 0, %v93
    %v95 = vrot.slane %v75, %v94
    %v96 = vmul.f32 %v78, %v95
    %v97 = vmul.f32 %v82, %v95
    %v98 = vmul.f32 %v86, %v95
    %v99 = vmul.f32 %v90, %v95
    %v100 = vadd.f32 %v71, %v96
    %v101 = vadd.f32 %v72, %v97
    %v102 = vadd.f32 %v73, %v98
    %v103 = vadd.f32 %v74, %v99
    %v104 = vld [vmem:[%s3 + $0xa] sm:$0x1]
    %105 = vset.pattern.permute.xlu0 2
    %106 = vperm.xlu0 %105, %v42
    %v107 = vpop.permute.xlu0 %106
    %109 = vset.pattern.permute.xlu0 2
    %110 = vperm.xlu0 %109, %v43
    %v111 = vpop.permute.xlu0 %110
    %113 = vset.pattern.permute.xlu0 2
    %114 = vperm.xlu0 %113, %v44
    %v115 = vpop.permute.xlu0 %114
    %117 = vset.pattern.permute.xlu0 2
    %118 = vperm.xlu0 %117, %v45
    %v119 = vpop.permute.xlu0 %118
    %v121 = vlaneseq
    %v122 = vshrl.u32 %v121, 7
    %v123 = vsub.s32 0, %v122
    %v124 = vrot.slane %v104, %v123
    %v125 = vmul.f32 %v107, %v124
    %v126 = vmul.f32 %v111, %v124
    %v127 = vmul.f32 %v115, %v124
    %v128 = vmul.f32 %v119, %v124
    %v129 = vadd.f32 %v100, %v125
    %v130 = vadd.f32 %v101, %v126
    %v131 = vadd.f32 %v102, %v127
    %v132 = vadd.f32 %v103, %v128
    %v133 = vld [vmem:[%s3] sm:$0x1]
    %v134 = vlaneseq
    %v135 = vshrl.u32 %v134, 7
    %v136 = vsub.s32 0, %v135
    %v137 = vrot.slane %v133, %v136
    %v138 = vadd.f32 %v129, %v137
    %v139 = vadd.f32 %v130, %v137
    %v140 = vadd.f32 %v131, %v137
    %v141 = vadd.f32 %v132, %v137
    %v142 = vmax.f32 %v138, 0.0
    %v143 = vmax.f32 %v139, 0.0
    %v144 = vmax.f32 %v140, 0.0
    %v145 = vmax.f32 %v141, 0.0
    %v146 = vpack.c.bf16 %v143, %v142
    %v147 = vpack.c.bf16 %v145, %v144
    %v148 = vld [vmem:[#allocation2] sm:$0xf]
    %v149 = vld [vmem:[#allocation2 + $0x4] sm:$0xf]
    %v150 = vld [vmem:[#allocation2 + $0x8] sm:$0xf]
    %v151 = vld [vmem:[#allocation2 + $0xc] sm:$0xf]
    %v152 = vld [vmem:[#allocation2 + $0x10] sm:$0xf]
    %v153 = vld [vmem:[#allocation2 + $0x14] sm:$0xf]
    %v154 = vld [vmem:[#allocation2 + $0x18] sm:$0xf]
    %v155 = vld [vmem:[#allocation2 + $0x1c] sm:$0xf]
    %v156 = vld [vmem:[#allocation2 + $0x20] sm:$0xf]
    %v157 = vld [vmem:[#allocation2 + $0x24] sm:$0xf]
    %v158 = vld [vmem:[#allocation2 + $0x28] sm:$0xf]
    %v159 = vld [vmem:[#allocation2 + $0x2c] sm:$0xf]
    %v160 = vld [vmem:[#allocation2 + $0x30] sm:$0xf]
    %v161 = vld [vmem:[#allocation2 + $0x34] sm:$0xf]
    %v162 = vld [vmem:[#allocation2 + $0x38] sm:$0xf]
    %v163 = vld [vmem:[#allocation2 + $0x3c] sm:$0xf]
    %v164 = vld [vmem:[%s3 + $0x1] sm:$0x1]
    %v165 = vlaneseq
    %v166 = vshrl.u32 %v165, 7
    %v167 = vsub.s32 0, %v166
    %v168 = vrot.slane %v164, %v167
    %v185 = vunpack.c.l.b16 %v148
    %v186 = vunpack.c.l.b16 %v149
    %v187 = vunpack.c.l.b16 %v150
    %v188 = vunpack.c.l.b16 %v151
    %v189 = vunpack.c.l.b16 %v152
    %v190 = vunpack.c.l.b16 %v153
    %v191 = vunpack.c.l.b16 %v154
    %v192 = vunpack.c.l.b16 %v155
    %v193 = vunpack.c.l.b16 %v156
    %v194 = vunpack.c.l.b16 %v157
    %v195 = vunpack.c.l.b16 %v158
    %v196 = vunpack.c.l.b16 %v159
    %v197 = vunpack.c.l.b16 %v160
    %v198 = vunpack.c.l.b16 %v161
    %v199 = vunpack.c.l.b16 %v162
    %v200 = vunpack.c.l.b16 %v163
    %v201 = vpack.c.b16 %v186, %v185
    %v202 = vpack.c.b16 %v188, %v187
    %v203 = vpack.c.b16 %v190, %v189
    %v204 = vpack.c.b16 %v192, %v191
    %v205 = vpack.c.b16 %v194, %v193
    %v206 = vpack.c.b16 %v196, %v195
    %v207 = vpack.c.b16 %v198, %v197
    %v208 = vpack.c.b16 %v200, %v199
    %217 = vmatprep.subr.bf16.mxu0 0
    %218 = vmatpush1.bf16.msra.mxu0 %v201
    %219 = vmatprep.subr.bf16.mxu0 0
    %220 = vmatpush1.bf16.msra.mxu0 %v202
    %221 = vmatprep.subr.bf16.mxu0 0
    %222 = vmatpush1.bf16.msra.mxu0 %v203
    %223 = vmatprep.subr.bf16.mxu0 0
    %224 = vmatpush1.bf16.msra.mxu0 %v204
    %225 = vmatprep.subr.bf16.mxu0 0
    %226 = vmatpush1.bf16.msra.mxu0 %v205
    %227 = vmatprep.subr.bf16.mxu0 0
    %228 = vmatpush1.bf16.msra.mxu0 %v206
    %229 = vmatprep.subr.bf16.mxu0 0
    %230 = vmatpush1.bf16.msra.mxu0 %v207
    %231 = vmatprep.subr.bf16.mxu0 0
    %232 = vmatpush1.bf16.msra.mxu0 %v208
    %233 = vmatprep.subr.bf16.mxu0 0
    %234 = vmatpush1.bf16.msra.mxu0 0
    %235 = vmatprep.subr.bf16.mxu0 0
    %236 = vmatpush1.bf16.msra.mxu0 0
    %237 = vmatprep.subr.bf16.mxu0 0
    %238 = vmatpush1.bf16.msra.mxu0 0
    %239 = vmatprep.subr.bf16.mxu0 0
    %240 = vmatpush1.bf16.msra.mxu0 0
    %241 = vmatprep.subr.bf16.mxu0 0
    %242 = vmatpush1.bf16.msra.mxu0 0
    %243 = vmatprep.subr.bf16.mxu0 0
    %244 = vmatpush1.bf16.msra.mxu0 0
    %245 = vmatprep.subr.bf16.mxu0 0
    %246 = vmatpush1.bf16.msra.mxu0 0
    %247 = vmatprep.subr.bf16.mxu0 0
    %248 = vmatpush1.bf16.msra.mxu0 0
    %249 = vmatprep.mubr.bf16.mxu0 0
    %250 = vmatmul.mubr.bf16.gmra.mrb[0].mxu0 %v146
    %v251 = vpop.f32.mrb[0].mxu0
    %v252 = vadd.f32 %v168, %v251
    %v253 = vpop.f32.mrb[0].mxu0
    %v254 = vpop.f32.mrb[0].mxu0
    %v255 = vadd.f32 %v168, %v254
    %v256 = vpop.f32.mrb[0].mxu0
    %257 = vmatprep.mubr.bf16.mxu0 0
    %258 = vmatmul.mubr.bf16.gmra.mrb[0].mxu0 %v147
    %v259 = vpop.f32.mrb[0].mxu0
    %v260 = vadd.f32 %v168, %v259
    %v261 = vpop.f32.mrb[0].mxu0
    %v262 = vpop.f32.mrb[0].mxu0
    %v263 = vadd.f32 %v168, %v262
    %v264 = vpop.f32.mrb[0].mxu0
    %265 = vdwg.mxu0
    %v266 = vmax.f32 %v252, 0.0
    %v267 = vmax.f32 %v255, 0.0
    %v268 = vmax.f32 %v260, 0.0
    %v269 = vmax.f32 %v263, 0.0
    %v270 = vpack.c.bf16 %v267, %v266
    %v271 = vpack.c.bf16 %v269, %v268
    %v272 = vld [vmem:[#allocation2 + $0x40] sm:$0xf]
    %v273 = vld [vmem:[#allocation2 + $0x44] sm:$0xf]
    %v274 = vld [vmem:[#allocation2 + $0x48] sm:$0xf]
    %v275 = vld [vmem:[#allocation2 + $0x4c] sm:$0xf]
    %v276 = vld [vmem:[#allocation2 + $0x50] sm:$0xf]
    %v277 = vld [vmem:[#allocation2 + $0x54] sm:$0xf]
    %v278 = vld [vmem:[#allocation2 + $0x58] sm:$0xf]
    %v279 = vld [vmem:[#allocation2 + $0x5c] sm:$0xf]
    %v280 = vld [vmem:[#allocation2 + $0x60] sm:$0xf]
    %v281 = vld [vmem:[#allocation2 + $0x64] sm:$0xf]
    %v282 = vld [vmem:[#allocation2 + $0x68] sm:$0xf]
    %v283 = vld [vmem:[#allocation2 + $0x6c] sm:$0xf]
    %v284 = vld [vmem:[#allocation2 + $0x70] sm:$0xf]
    %v285 = vld [vmem:[#allocation2 + $0x74] sm:$0xf]
    %v286 = vld [vmem:[#allocation2 + $0x78] sm:$0xf]
    %v287 = vld [vmem:[#allocation2 + $0x7c] sm:$0xf]
    %v288 = vld [vmem:[%s3 + $0x2] sm:$0x1]
    %v289 = vlaneseq
    %v290 = vshrl.u32 %v289, 7
    %v291 = vsub.s32 0, %v290
    %v292 = vrot.slane %v288, %v291
    %v309 = vunpack.c.l.b16 %v272
    %v310 = vunpack.c.l.b16 %v273
    %v311 = vunpack.c.l.b16 %v274
    %v312 = vunpack.c.l.b16 %v275
    %v313 = vunpack.c.l.b16 %v276
    %v314 = vunpack.c.l.b16 %v277
    %v315 = vunpack.c.l.b16 %v278
    %v316 = vunpack.c.l.b16 %v279
    %v317 = vunpack.c.l.b16 %v280
    %v318 = vunpack.c.l.b16 %v281
    %v319 = vunpack.c.l.b16 %v282
    %v320 = vunpack.c.l.b16 %v283
    %v321 = vunpack.c.l.b16 %v284
    %v322 = vunpack.c.l.b16 %v285
    %v323 = vunpack.c.l.b16 %v286
    %v324 = vunpack.c.l.b16 %v287
    %v325 = vpack.c.b16 %v310, %v309
    %v326 = vpack.c.b16 %v312, %v311
    %v327 = vpack.c.b16 %v314, %v313
    %v328 = vpack.c.b16 %v316, %v315
    %v329 = vpack.c.b16 %v318, %v317
    %v330 = vpack.c.b16 %v320, %v319
    %v331 = vpack.c.b16 %v322, %v321
    %v332 = vpack.c.b16 %v324, %v323
    %341 = vmatprep.subr.bf16.mxu0 0
    %342 = vmatpush1.bf16.msra.mxu0 %v325
    %343 = vmatprep.subr.bf16.mxu0 0
    %344 = vmatpush1.bf16.msra.mxu0 %v326
    %345 = vmatprep.subr.bf16.mxu0 0
    %346 = vmatpush1.bf16.msra.mxu0 %v327
    %347 = vmatprep.subr.bf16.mxu0 0
    %348 = vmatpush1.bf16.msra.mxu0 %v328
    %349 = vmatprep.subr.bf16.mxu0 0
    %350 = vmatpush1.bf16.msra.mxu0 %v329
    %351 = vmatprep.subr.bf16.mxu0 0
    %352 = vmatpush1.bf16.msra.mxu0 %v330
    %353 = vmatprep.subr.bf16.mxu0 0
    %354 = vmatpush1.bf16.msra.mxu0 %v331
    %355 = vmatprep.subr.bf16.mxu0 0
    %356 = vmatpush1.bf16.msra.mxu0 %v332
    %357 = vmatprep.subr.bf16.mxu0 0
    %358 = vmatpush1.bf16.msra.mxu0 0
    %359 = vmatprep.subr.bf16.mxu0 0
    %360 = vmatpush1.bf16.msra.mxu0 0
    %361 = vmatprep.subr.bf16.mxu0 0
    %362 = vmatpush1.bf16.msra.mxu0 0
    %363 = vmatprep.subr.bf16.mxu0 0
    %364 = vmatpush1.bf16.msra.mxu0 0
    %365 = vmatprep.subr.bf16.mxu0 0
    %366 = vmatpush1.bf16.msra.mxu0 0
    %367 = vmatprep.subr.bf16.mxu0 0
    %368 = vmatpush1.bf16.msra.mxu0 0
    %369 = vmatprep.subr.bf16.mxu0 0
    %370 = vmatpush1.bf16.msra.mxu0 0
    %371 = vmatprep.subr.bf16.mxu0 0
    %372 = vmatpush1.bf16.msra.mxu0 0
    %373 = vmatprep.mubr.bf16.mxu0 0
    %374 = vmatmul.mubr.bf16.gmra.mrb[0].mxu0 %v270
    %v375 = vpop.f32.mrb[0].mxu0
    %v376 = vadd.f32 %v292, %v375
    %v377 = vpop.f32.mrb[0].mxu0
    %v378 = vpop.f32.mrb[0].mxu0
    %v379 = vadd.f32 %v292, %v378
    %v380 = vpop.f32.mrb[0].mxu0
    %381 = vmatprep.mubr.bf16.mxu0 0
    %382 = vmatmul.mubr.bf16.gmra.mrb[0].mxu0 %v271
    %v383 = vpop.f32.mrb[0].mxu0
    %v384 = vadd.f32 %v292, %v383
    %v385 = vpop.f32.mrb[0].mxu0
    %v386 = vpop.f32.mrb[0].mxu0
    %v387 = vadd.f32 %v292, %v386
    %v388 = vpop.f32.mrb[0].mxu0
    %389 = vdwg.mxu0
    %v390 = vmax.f32 %v376, 0.0
    %v391 = vmax.f32 %v379, 0.0
    %v392 = vmax.f32 %v384, 0.0
    %v393 = vmax.f32 %v387, 0.0
    %v394 = vmax.f32 %v390, %v391
    %v395 = vrot.slane %v394, 4
    %v396 = vmax.f32 %v394, %v395
    %v397 = vrot.slane %v396, 2
    %v398 = vmax.f32 %v396, %v397
    %v399 = vrot.slane %v398, 1
    %v400 = vmax.f32 %v398, %v399
    %v401 = vmax.f32 %v392, %v393
    %v402 = vrot.slane %v401, 4
    %v403 = vmax.f32 %v401, %v402
    %v404 = vrot.slane %v403, 2
    %v405 = vmax.f32 %v403, %v404
    %v406 = vrot.slane %v405, 1
    %v407 = vmax.f32 %v405, %v406
    %vm410 = vcmask 1041409
    %v411 = vsel %vm410, %v407, %v400
    %vm413 = vcmask 1041408
    %v414 = vsel %vm413, %v411, 0.0
    %v415 = vpack.c.bf16 %v414, %v414
    %v416 = vld [vmem:[#allocation2 + $0x80] sm:$0xf]
    %v417 = vld [vmem:[#allocation2 + $0x84] sm:$0xf]
    %v418 = vld [vmem:[#allocation2 + $0x88] sm:$0xf]
    %v419 = vld [vmem:[#allocation2 + $0x8c] sm:$0xf]
    %v420 = vld [vmem:[#allocation2 + $0x90] sm:$0xf]
    %v421 = vld [vmem:[#allocation2 + $0x94] sm:$0xf]
    %v422 = vld [vmem:[#allocation2 + $0x98] sm:$0xf]
    %v423 = vld [vmem:[#allocation2 + $0x9c] sm:$0xf]
    %v424 = vld [vmem:[#allocation2 + $0xa0] sm:$0xf]
    %v425 = vld [vmem:[#allocation2 + $0xa4] sm:$0xf]
    %v426 = vld [vmem:[#allocation2 + $0xa8] sm:$0xf]
    %v427 = vld [vmem:[#allocation2 + $0xac] sm:$0xf]
    %v428 = vld [vmem:[#allocation2 + $0xb0] sm:$0xf]
    %v429 = vld [vmem:[#allocation2 + $0xb4] sm:$0xf]
    %v430 = vld [vmem:[#allocation2 + $0xb8] sm:$0xf]
    %v431 = vld [vmem:[#allocation2 + $0xbc] sm:$0xf]
    %v432 = vld [vmem:[%s3 + $0x3] sm:$0x1]
    %v433 = vlaneseq
    %v434 = vshrl.u32 %v433, 7
    %v435 = vsub.s32 0, %v434
    %v436 = vrot.slane %v432, %v435
    %v453 = vunpack.c.l.b16 %v416
    %v454 = vunpack.c.l.b16 %v417
    %v455 = vunpack.c.l.b16 %v418
    %v456 = vunpack.c.l.b16 %v419
    %v457 = vunpack.c.l.b16 %v420
    %v458 = vunpack.c.l.b16 %v421
    %v459 = vunpack.c.l.b16 %v422
    %v460 = vunpack.c.l.b16 %v423
    %v461 = vunpack.c.l.b16 %v424
    %v462 = vunpack.c.l.b16 %v425
    %v463 = vunpack.c.l.b16 %v426
    %v464 = vunpack.c.l.b16 %v427
    %v465 = vunpack.c.l.b16 %v428
    %v466 = vunpack.c.l.b16 %v429
    %v467 = vunpack.c.l.b16 %v430
    %v468 = vunpack.c.l.b16 %v431
    %v469 = vpack.c.b16 %v454, %v453
    %v470 = vpack.c.b16 %v456, %v455
    %v471 = vpack.c.b16 %v458, %v457
    %v472 = vpack.c.b16 %v460, %v459
    %v473 = vpack.c.b16 %v462, %v461
    %v474 = vpack.c.b16 %v464, %v463
    %v475 = vpack.c.b16 %v466, %v465
    %v476 = vpack.c.b16 %v468, %v467
    %485 = vmatprep.subr.bf16.mxu0 0
    %486 = vmatpush1.bf16.msra.mxu0 %v469
    %487 = vmatprep.subr.bf16.mxu0 0
    %488 = vmatpush1.bf16.msra.mxu0 %v470
    %489 = vmatprep.subr.bf16.mxu0 0
    %490 = vmatpush1.bf16.msra.mxu0 %v471
    %491 = vmatprep.subr.bf16.mxu0 0
    %492 = vmatpush1.bf16.msra.mxu0 %v472
    %493 = vmatprep.subr.bf16.mxu0 0
    %494 = vmatpush1.bf16.msra.mxu0 %v473
    %495 = vmatprep.subr.bf16.mxu0 0
    %496 = vmatpush1.bf16.msra.mxu0 %v474
    %497 = vmatprep.subr.bf16.mxu0 0
    %498 = vmatpush1.bf16.msra.mxu0 %v475
    %499 = vmatprep.subr.bf16.mxu0 0
    %500 = vmatpush1.bf16.msra.mxu0 %v476
    %501 = vmatprep.subr.bf16.mxu0 0
    %502 = vmatpush1.bf16.msra.mxu0 0
    %503 = vmatprep.subr.bf16.mxu0 0
    %504 = vmatpush1.bf16.msra.mxu0 0
    %505 = vmatprep.subr.bf16.mxu0 0
    %506 = vmatpush1.bf16.msra.mxu0 0
    %507 = vmatprep.subr.bf16.mxu0 0
    %508 = vmatpush1.bf16.msra.mxu0 0
    %509 = vmatprep.subr.bf16.mxu0 0
    %510 = vmatpush1.bf16.msra.mxu0 0
    %511 = vmatprep.subr.bf16.mxu0 0
    %512 = vmatpush1.bf16.msra.mxu0 0
    %513 = vmatprep.subr.bf16.mxu0 0
    %514 = vmatpush1.bf16.msra.mxu0 0
    %515 = vmatprep.subr.bf16.mxu0 0
    %516 = vmatpush1.bf16.msra.mxu0 0
    %517 = vmatprep.mubr.bf16.mxu0 0
    %518 = vmatmul.mubr.bf16.gmra.mrb[0].mxu0 %v415
    %v519 = vpop.f32.mrb[0].mxu0
    %v520 = vadd.f32 %v436, %v519
    %v521 = vpop.f32.mrb[0].mxu0
    %v522 = vpop.f32.mrb[0].mxu0
    %v523 = vpop.f32.mrb[0].mxu0
    %524 = vdwg.mxu0
    %v525 = vmax.f32 %v520, 0.0
    %v526 = vpack.c.bf16 %v525, %v525
    %v527 = vld [vmem:[#allocation2 + $0xc0] sm:$0xf]
    %v528 = vld [vmem:[#allocation2 + $0xc4] sm:$0xf]
    %v529 = vld [vmem:[#allocation2 + $0xc8] sm:$0xf]
    %v530 = vld [vmem:[#allocation2 + $0xcc] sm:$0xf]
    %v531 = vld [vmem:[#allocation2 + $0xd0] sm:$0xf]
    %v532 = vld [vmem:[#allocation2 + $0xd4] sm:$0xf]
    %v533 = vld [vmem:[#allocation2 + $0xd8] sm:$0xf]
    %v534 = vld [vmem:[#allocation2 + $0xdc] sm:$0xf]
    %v535 = vld [vmem:[#allocation2 + $0xe0] sm:$0xf]
    %v536 = vld [vmem:[#allocation2 + $0xe4] sm:$0xf]
    %v537 = vld [vmem:[#allocation2 + $0xe8] sm:$0xf]
    %v538 = vld [vmem:[#allocation2 + $0xec] sm:$0xf]
    %v539 = vld [vmem:[#allocation2 + $0xf0] sm:$0xf]
    %v540 = vld [vmem:[#allocation2 + $0xf4] sm:$0xf]
    %v541 = vld [vmem:[#allocation2 + $0xf8] sm:$0xf]
    %v542 = vld [vmem:[#allocation2 + $0xfc] sm:$0xf]
    %v543 = vld [vmem:[%s3 + $0x4] sm:$0x1]
    %v544 = vlaneseq
    %v545 = vshrl.u32 %v544, 7
    %v546 = vsub.s32 0, %v545
    %v547 = vrot.slane %v543, %v546
    %v564 = vunpack.c.l.b16 %v527
    %v565 = vunpack.c.l.b16 %v528
    %v566 = vunpack.c.l.b16 %v529
    %v567 = vunpack.c.l.b16 %v530
    %v568 = vunpack.c.l.b16 %v531
    %v569 = vunpack.c.l.b16 %v532
    %v570 = vunpack.c.l.b16 %v533
    %v571 = vunpack.c.l.b16 %v534
    %v572 = vunpack.c.l.b16 %v535
    %v573 = vunpack.c.l.b16 %v536
    %v574 = vunpack.c.l.b16 %v537
    %v575 = vunpack.c.l.b16 %v538
    %v576 = vunpack.c.l.b16 %v539
    %v577 = vunpack.c.l.b16 %v540
    %v578 = vunpack.c.l.b16 %v541
    %v579 = vunpack.c.l.b16 %v542
    %v580 = vpack.c.b16 %v565, %v564
    %v581 = vpack.c.b16 %v567, %v566
    %v582 = vpack.c.b16 %v569, %v568
    %v583 = vpack.c.b16 %v571, %v570
    %v584 = vpack.c.b16 %v573, %v572
    %v585 = vpack.c.b16 %v575, %v574
    %v586 = vpack.c.b16 %v577, %v576
    %v587 = vpack.c.b16 %v579, %v578
    %596 = vmatprep.subr.bf16.mxu0 0
    %597 = vmatpush1.bf16.msra.mxu0 %v580
    %598 = vmatprep.subr.bf16.mxu0 0
    %599 = vmatpush1.bf16.msra.mxu0 %v581
    %600 = vmatprep.subr.bf16.mxu0 0
    %601 = vmatpush1.bf16.msra.mxu0 %v582
    %602 = vmatprep.subr.bf16.mxu0 0
    %603 = vmatpush1.bf16.msra.mxu0 %v583
    %604 = vmatprep.subr.bf16.mxu0 0
    %605 = vmatpush1.bf16.msra.mxu0 %v584
    %606 = vmatprep.subr.bf16.mxu0 0
    %607 = vmatpush1.bf16.msra.mxu0 %v585
    %608 = vmatprep.subr.bf16.mxu0 0
    %609 = vmatpush1.bf16.msra.mxu0 %v586
    %610 = vmatprep.subr.bf16.mxu0 0
    %611 = vmatpush1.bf16.msra.mxu0 %v587
    %612 = vmatprep.subr.bf16.mxu0 0
    %613 = vmatpush1.bf16.msra.mxu0 0
    %614 = vmatprep.subr.bf16.mxu0 0
    %615 = vmatpush1.bf16.msra.mxu0 0
    %616 = vmatprep.subr.bf16.mxu0 0
    %617 = vmatpush1.bf16.msra.mxu0 0
    %618 = vmatprep.subr.bf16.mxu0 0
    %619 = vmatpush1.bf16.msra.mxu0 0
    %620 = vmatprep.subr.bf16.mxu0 0
    %621 = vmatpush1.bf16.msra.mxu0 0
    %622 = vmatprep.subr.bf16.mxu0 0
    %623 = vmatpush1.bf16.msra.mxu0 0
    %624 = vmatprep.subr.bf16.mxu0 0
    %625 = vmatpush1.bf16.msra.mxu0 0
    %626 = vmatprep.subr.bf16.mxu0 0
    %627 = vmatpush1.bf16.msra.mxu0 0
    %628 = vmatprep.mubr.bf16.mxu0 0
    %629 = vmatmul.mubr.bf16.gmra.mrb[0].mxu0 %v526
    %v630 = vpop.f32.mrb[0].mxu0
    %v631 = vadd.f32 %v547, %v630
    %v632 = vpop.f32.mrb[0].mxu0
    %v633 = vpop.f32.mrb[0].mxu0
    %v634 = vpop.f32.mrb[0].mxu0
    %635 = vdwg.mxu0
    %v636 = vmax.f32 %v631, 0.0
    %v637 = vpack.c.bf16 %v636, %v636
    %v638 = vld [vmem:[#allocation2 + $0x100] sm:$0xf]
    %v639 = vld [vmem:[#allocation2 + $0x104] sm:$0xf]
    %v640 = vld [vmem:[#allocation2 + $0x108] sm:$0xf]
    %v641 = vld [vmem:[#allocation2 + $0x10c] sm:$0xf]
    %v642 = vld [vmem:[#allocation2 + $0x110] sm:$0xf]
    %v643 = vld [vmem:[#allocation2 + $0x114] sm:$0xf]
    %v644 = vld [vmem:[#allocation2 + $0x118] sm:$0xf]
    %v645 = vld [vmem:[#allocation2 + $0x11c] sm:$0xf]
    %v646 = vld [vmem:[#allocation2 + $0x120] sm:$0xf]
    %v647 = vld [vmem:[#allocation2 + $0x124] sm:$0xf]
    %v648 = vld [vmem:[#allocation2 + $0x128] sm:$0xf]
    %v649 = vld [vmem:[#allocation2 + $0x12c] sm:$0xf]
    %v650 = vld [vmem:[#allocation2 + $0x130] sm:$0xf]
    %v651 = vld [vmem:[#allocation2 + $0x134] sm:$0xf]
    %v652 = vld [vmem:[#allocation2 + $0x138] sm:$0xf]
    %v653 = vld [vmem:[#allocation2 + $0x13c] sm:$0xf]
    %v654 = vld [vmem:[%s3 + $0x5] sm:$0x1]
    %v655 = vlaneseq
    %v656 = vshrl.u32 %v655, 7
    %v657 = vsub.s32 0, %v656
    %v658 = vrot.slane %v654, %v657
    %v675 = vunpack.c.l.b16 %v638
    %v676 = vunpack.c.l.b16 %v639
    %v677 = vunpack.c.l.b16 %v640
    %v678 = vunpack.c.l.b16 %v641
    %v679 = vunpack.c.l.b16 %v642
    %v680 = vunpack.c.l.b16 %v643
    %v681 = vunpack.c.l.b16 %v644
    %v682 = vunpack.c.l.b16 %v645
    %v683 = vunpack.c.l.b16 %v646
    %v684 = vunpack.c.l.b16 %v647
    %v685 = vunpack.c.l.b16 %v648
    %v686 = vunpack.c.l.b16 %v649
    %v687 = vunpack.c.l.b16 %v650
    %v688 = vunpack.c.l.b16 %v651
    %v689 = vunpack.c.l.b16 %v652
    %v690 = vunpack.c.l.b16 %v653
    %v691 = vpack.c.b16 %v676, %v675
    %v692 = vpack.c.b16 %v678, %v677
    %v693 = vpack.c.b16 %v680, %v679
    %v694 = vpack.c.b16 %v682, %v681
    %v695 = vpack.c.b16 %v684, %v683
    %v696 = vpack.c.b16 %v686, %v685
    %v697 = vpack.c.b16 %v688, %v687
    %v698 = vpack.c.b16 %v690, %v689
    %707 = vmatprep.subr.bf16.mxu0 0
    %708 = vmatpush1.bf16.msra.mxu0 %v691
    %709 = vmatprep.subr.bf16.mxu0 0
    %710 = vmatpush1.bf16.msra.mxu0 %v692
    %711 = vmatprep.subr.bf16.mxu0 0
    %712 = vmatpush1.bf16.msra.mxu0 %v693
    %713 = vmatprep.subr.bf16.mxu0 0
    %714 = vmatpush1.bf16.msra.mxu0 %v694
    %715 = vmatprep.subr.bf16.mxu0 0
    %716 = vmatpush1.bf16.msra.mxu0 %v695
    %717 = vmatprep.subr.bf16.mxu0 0
    %718 = vmatpush1.bf16.msra.mxu0 %v696
    %719 = vmatprep.subr.bf16.mxu0 0
    %720 = vmatpush1.bf16.msra.mxu0 %v697
    %721 = vmatprep.subr.bf16.mxu0 0
    %722 = vmatpush1.bf16.msra.mxu0 %v698
    %723 = vmatprep.subr.bf16.mxu0 0
    %724 = vmatpush1.bf16.msra.mxu0 0
    %725 = vmatprep.subr.bf16.mxu0 0
    %726 = vmatpush1.bf16.msra.mxu0 0
    %727 = vmatprep.subr.bf16.mxu0 0
    %728 = vmatpush1.bf16.msra.mxu0 0
    %729 = vmatprep.subr.bf16.mxu0 0
    %730 = vmatpush1.bf16.msra.mxu0 0
    %731 = vmatprep.subr.bf16.mxu0 0
    %732 = vmatpush1.bf16.msra.mxu0 0
    %733 = vmatprep.subr.bf16.mxu0 0
    %734 = vmatpush1.bf16.msra.mxu0 0
    %735 = vmatprep.subr.bf16.mxu0 0
    %736 = vmatpush1.bf16.msra.mxu0 0
    %737 = vmatprep.subr.bf16.mxu0 0
    %738 = vmatpush1.bf16.msra.mxu0 0
    %739 = vmatprep.mubr.bf16.mxu0 0
    %740 = vmatmul.mubr.bf16.gmra.mrb[0].mxu0 %v637
    %v741 = vpop.f32.mrb[0].mxu0
    %v742 = vadd.f32 %v658, %v741
    %v743 = vpop.f32.mrb[0].mxu0
    %v744 = vpop.f32.mrb[0].mxu0
    %v745 = vpop.f32.mrb[0].mxu0
    %746 = vdwg.mxu0
    %747 = vst [vmem:[#allocation6] sm:$0xff] %v742
    %v748 = vld [vmem:[%s1] sm:$0xff]
    %v749 = vld [vmem:[%s1 + $0x8] sm:$0xff]
    %v750 = vsub.f32 %v742, %v749
    %v751 = vmul.f32 %v750, %v750
    %v752 = vmul.f32 %v751, %v748
    %753 = vadd.xlane.f32.xlu0 %v752
    %v754 = vpop.xlane.xlu0 %753
    %v755 = vrot.slane %v754, 4
    %v756 = vadd.f32 %v754, %v755
    %v757 = vrot.slane %v756, 2
    %v758 = vadd.f32 %v756, %v757
    %v759 = vrot.slane %v758, 1
    %v760 = vadd.f32 %v758, %v759
    %s761 = vtos %v760
    %s762 = scalar_lea.smem [#allocation7], 0
    %763 = sst [smem:[%s762]] %s761
    // Predicated region
    $region22: #{tpu_custom_call.1} parent=1 // pred_check
      _
    $region23: #{tpu_custom_call.1} parent=1 // pred_check_branch
      %765 = sbr.rel (0) target = $region25
    $region24: #{tpu_custom_call.1} parent=1 // pred_region
      %s767 = ssub.s32 128, 128
      %768 = vsyncadd [#allocation4], %s767
      %s770 = sshll.u32 [#allocation6], 4
      %s771 = int_to_ptr.vmem [resolvable:$true] %s770
      %773 = dma.vmem_to_hbm [thread:$0]  %s771, 128, %s4, [#allocation4]
    $region25: #{tpu_custom_call.1} parent=1 // pred_fallthru
      _
    // Predicated region
    $region26: #{tpu_custom_call.1} parent=1 // pred_check
      _
    $region27: #{tpu_custom_call.1} parent=1 // pred_check_branch
      %775 = sbr.rel (0) target = $region29
    $region28: #{tpu_custom_call.1} parent=1 // pred_region
      %s777 = ssub.s32 16, 16
      %778 = vsyncadd [#allocation5], %s777
      %781 = dma.smem_to_hbm [#allocation7], 16, %s5, [#allocation5]
    $region29: #{tpu_custom_call.1} parent=1 // pred_fallthru
      _
    // Predicated region
    $region30: #{tpu_custom_call.1} parent=1 // pred_check
      _
    $region31: #{tpu_custom_call.1} parent=1 // pred_check_branch
      %783 = sbr.rel (0) target = $region33
    $region32: #{tpu_custom_call.1} parent=1 // pred_region
      %784 = dma.done [#allocation4], 128
    $region33: #{tpu_custom_call.1} parent=1 // pred_fallthru
      _
    // Predicated region
    $region34: #{tpu_custom_call.1} parent=1 // pred_check
      _
    $region35: #{tpu_custom_call.1} parent=1 // pred_check_branch
      %786 = sbr.rel (0) target = $region37
    $region36: #{tpu_custom_call.1} parent=1 // pred_region
      %787 = dma.done [#allocation5], 16
    $region37: #{tpu_custom_call.1} parent=1 // pred_fallthru
      _
    %788 = sfence
    %789 = vsyncpa [#allocation3], 1
    %790 = vsyncpa [#allocation4], 1
    %791 = vsyncpa [#allocation5], 1

</llo_original>
